<compile_context>
chip_gen: v5e
topology: v5e:2x2
jax: 0.10.0
libtpu: 0.0.40
codegen_flags: <defaults>
</compile_context>

<pallas_src>
import functools

import jax
import jax.numpy as jnp
from jax.experimental import pallas as pl
from jax.experimental.pallas import tpu as pltpu


def _sge_kernel(w_ref, b_ref, x_ref, o_ref, *, hw):
    """Processes a (T, cpg, hw_pad) block of (batch*group) slices.

    w_ref, b_ref: (T, 1, 1) f32 per-slice affine parameters.
    x_ref, o_ref: (T, cpg, hw_pad) tiles in the input's native dtype.
    hw:           true (unpadded) spatial size h*w (static).
    """
    x = x_ref[...].astype(jnp.float32)                        # (T, cpg, hw_pad)
    hw_pad = x.shape[-1]
    inv_hw = 1.0 / hw

    # nn.AdaptiveAvgPool2d(1): per-channel spatial mean (padded lanes are 0).
    chan_mean = jnp.sum(x, axis=2, keepdims=True) * inv_hw    # (T, cpg, 1)

    # xn = (x * avg_pool(x)).sum(dim=channel)
    xn = jnp.sum(x * chan_mean, axis=1, keepdims=True)        # (T, 1, hw_pad)

    # normalize over spatial: subtract mean, divide by unbiased std (torch.std)
    t_mean = jnp.sum(xn, axis=2, keepdims=True) * inv_hw      # (T, 1, 1)
    t = xn - t_mean
    if hw_pad != hw:
        lane = jax.lax.broadcasted_iota(jnp.int32, (1, 1, hw_pad), 2)
        t = jnp.where(lane < hw, t, 0.0)                      # drop padded lanes
    var = jnp.sum(t * t, axis=2, keepdims=True) / (hw - 1)    # ddof=1, like torch
    std = jnp.sqrt(var) + 1e-5
    t = t / std

    # per-(batch, group) affine then sigmoid gate
    t = t * w_ref[...] + b_ref[...]                           # (T, 1, hw_pad)
    o_ref[...] = (x * jax.nn.sigmoid(t)).astype(o_ref.dtype)


def _pick_bg_tile(bg, slice_bytes, target_bytes=2 * 1024 * 1024, max_tile=128):
    """Largest divisor of bg whose block stays under target_bytes."""
    best = 1
    for d in range(1, bg + 1):
        if bg % d == 0 and d <= max_tile and d * slice_bytes <= target_bytes:
            best = d
    # Keep >= 2 grid steps when possible so both v7x TensorCores get work.
    if best == bg and bg >= 2:
        best = max(d for d in range(1, bg) if bg % d == 0)
    return best


def spatial_group_enhance(x, weight, bias, groups=4, bg_tile=None):
    """x: (b, c, h, w) NCHW.  weight, bias: (1, groups, 1, 1)."""
    b, c, h, w = x.shape
    assert c % groups == 0
    cpg = c // groups
    hw = h * w
    bg = b * groups

    # Lane-dense spatial axis: pad h*w up to a multiple of 128 if necessary.
    hw_pad = int(pl.cdiv(hw, 128)) * 128

    xg = x.reshape(bg, cpg, hw)
    if hw_pad != hw:
        xg = jnp.pad(xg, ((0, 0), (0, 0), (0, hw_pad - hw)))

    # Per-(batch, group) affine parameters: element bg -> group = bg % groups.
    w_bg = jnp.broadcast_to(weight.reshape(1, groups).astype(jnp.float32),
                            (b, groups)).reshape(bg, 1, 1)
    b_bg = jnp.broadcast_to(bias.reshape(1, groups).astype(jnp.float32),
                            (b, groups)).reshape(bg, 1, 1)

    if bg_tile is None:
        slice_bytes = cpg * hw_pad * x.dtype.itemsize
        bg_tile = _pick_bg_tile(bg, slice_bytes)
    assert bg % bg_tile == 0

    # Headroom for double-buffered in/out blocks plus f32 intermediates.
    block_bytes_f32 = bg_tile * cpg * hw_pad * 4
    vmem_limit = int(min(64 * 1024 * 1024,
                         max(32 * 1024 * 1024, 8 * block_bytes_f32)))

    out = pl.pallas_call(
        functools.partial(_sge_kernel, hw=hw),
        out_shape=jax.ShapeDtypeStruct((bg, cpg, hw_pad), x.dtype),
        grid=(bg // bg_tile,),
        in_specs=[
            pl.BlockSpec((bg_tile, 1, 1), lambda i: (i, 0, 0)),        # weight
            pl.BlockSpec((bg_tile, 1, 1), lambda i: (i, 0, 0)),        # bias
            pl.BlockSpec((bg_tile, cpg, hw_pad), lambda i: (i, 0, 0)),  # x
        ],
        out_specs=pl.BlockSpec((bg_tile, cpg, hw_pad), lambda i: (i, 0, 0)),
        compiler_params=pltpu.CompilerParams(
            dimension_semantics=("parallel",),
            vmem_limit_bytes=vmem_limit,
        ),
    )(w_bg, b_bg, xg)

    if hw_pad != hw:
        out = out[:, :, :hw]
    return out.reshape(b, c, h, w)


def _reference(x, weight, bias, groups=4):
    # Pure-JAX transliteration of the PyTorch forward for verification.
    b, c, h, w = x.shape
    xg = x.reshape(b * groups, c // groups, h, w)
    xn = xg * jnp.mean(xg, axis=(2, 3), keepdims=True)
    xn = jnp.sum(xn, axis=1, keepdims=True)
    t = xn.reshape(b * groups, -1)
    t = t - jnp.mean(t, axis=1, keepdims=True)
    std = jnp.std(t, axis=1, keepdims=True, ddof=1) + 1e-5
    t = t / std
    t = t.reshape(b, groups, h, w)
    t = t * weight + bias
    t = t.reshape(b * groups, 1, h, w)
    xg = xg * jax.nn.sigmoid(t)
    return xg.reshape(b, c, h, w)


if __name__ == "__main__":
    key = jax.random.PRNGKey(0)
    kx, kw, kb, kx2 = jax.random.split(key, 4)

    groups = 4
    # Module shapes: (1, groups, 1, 1).  PyTorch inits weight=0, bias=1; we use
    # small random values so the normalization / affine path is exercised.
    weight = 0.1 * jax.random.normal(kw, (1, groups, 1, 1), dtype=jnp.float32)
    bias = 1.0 + 0.1 * jax.random.normal(kb, (1, groups, 1, 1), dtype=jnp.float32)

    # Case 1: spatial size already a multiple of 128 (16*16 = 256).
    b, c, h, w = 2, 16, 16, 16
    x = jax.random.normal(kx, (b, c, h, w), dtype=jnp.float32)
    out = jax.block_until_ready(spatial_group_enhance(x, weight, bias, groups))
    ref = _reference(x, weight, bias, groups)
    assert out.shape == (b, c, h, w)
    assert jnp.allclose(out, ref, atol=1e-5, rtol=1e-5), \
        f"case1 max abs err {jnp.max(jnp.abs(out - ref))}"

    # Case 2: spatial size NOT a multiple of 128 (12*12 = 144 -> padded to 256),
    # exercising the lane-padding / masked-statistics path.
    b2, c2, h2, w2 = 2, 16, 12, 12
    x2 = jax.random.normal(kx2, (b2, c2, h2, w2), dtype=jnp.float32)
    out2 = jax.block_until_ready(spatial_group_enhance(x2, weight, bias, groups))
    ref2 = _reference(x2, weight, bias, groups)
    assert out2.shape == (b2, c2, h2, w2)
    assert jnp.allclose(out2, ref2, atol=1e-5, rtol=1e-5), \
        f"case2 max abs err {jnp.max(jnp.abs(out2 - ref2))}"

    print("KERNEL_OK")
</pallas_src>

<mosaic_0001>
module attributes {stable_mosaic.version = 11 : i64} {
  func.func @_sge_kernel(%arg0: i32, %arg1: memref<4x1x1xf32, #tpu.memory_space<vmem>>, %arg2: memref<4x1x1xf32, #tpu.memory_space<vmem>>, %arg3: memref<4x4x256xf32, #tpu.memory_space<vmem>>, %arg4: memref<4x4x256xf32, #tpu.memory_space<vmem>>) attributes {dimension_semantics = [#tpu.dimension_semantics<parallel>], iteration_bounds = array<i64: 2>, scalar_prefetch = 0 : i64, scratch_operands = 0 : i64, tpu.core_type = #tpu.core_type<tc>, window_params = [{transform_indices = @transform_0, window_bounds = array<i64: 4, 1, 1>}, {transform_indices = @transform_1, window_bounds = array<i64: 4, 1, 1>}, {transform_indices = @transform_2, window_bounds = array<i64: 4, 4, 256>}, {transform_indices = @transform_3, window_bounds = array<i64: 4, 4, 256>}]} {
    %c0 = arith.constant 0 : index
    %c0_0 = arith.constant 0 : index
    %c0_1 = arith.constant 0 : index
    %0 = vector.load %arg3[%c0, %c0_0, %c0_1] : memref<4x4x256xf32, #tpu.memory_space<vmem>>, vector<4x4x256xf32>
    %cst = arith.constant dense<0.000000e+00> : vector<4x4xf32>
    %1 = vector.multi_reduction <add>, %0, %cst [2] : vector<4x4x256xf32> to vector<4x4xf32>
    %2 = vector.shape_cast %1 : vector<4x4xf32> to vector<4x4x1xf32>
    %cst_2 = arith.constant 3.906250e-03 : f32
    %3 = vector.broadcast %cst_2 : f32 to vector<4x4x1xf32>
    %4 = arith.mulf %2, %3 : vector<4x4x1xf32>
    %5 = vector.broadcast %4 : vector<4x4x1xf32> to vector<4x4x256xf32>
    %6 = arith.mulf %0, %5 : vector<4x4x256xf32>
    %cst_3 = arith.constant dense<0.000000e+00> : vector<4x256xf32>
    %7 = vector.multi_reduction <add>, %6, %cst_3 [1] : vector<4x4x256xf32> to vector<4x256xf32>
    %8 = vector.shape_cast %7 : vector<4x256xf32> to vector<4x1x256xf32>
    %cst_4 = arith.constant dense<0.000000e+00> : vector<4x1xf32>
    %9 = vector.multi_reduction <add>, %8, %cst_4 [2] : vector<4x1x256xf32> to vector<4x1xf32>
    %10 = vector.shape_cast %9 : vector<4x1xf32> to vector<4x1x1xf32>
    %cst_5 = arith.constant 3.906250e-03 : f32
    %11 = vector.broadcast %cst_5 : f32 to vector<4x1x1xf32>
    %12 = arith.mulf %10, %11 : vector<4x1x1xf32>
    %13 = vector.broadcast %12 : vector<4x1x1xf32> to vector<4x1x256xf32>
    %14 = arith.subf %8, %13 : vector<4x1x256xf32>
    %15 = arith.mulf %14, %14 : vector<4x1x256xf32>
    %cst_6 = arith.constant dense<0.000000e+00> : vector<4x1xf32>
    %16 = vector.multi_reduction <add>, %15, %cst_6 [2] : vector<4x1x256xf32> to vector<4x1xf32>
    %17 = vector.shape_cast %16 : vector<4x1xf32> to vector<4x1x1xf32>
    %cst_7 = arith.constant 2.550000e+02 : f32
    %18 = vector.broadcast %cst_7 : f32 to vector<4x1x1xf32>
    %19 = arith.divf %17, %18 : vector<4x1x1xf32>
    %20 = math.sqrt %19 : vector<4x1x1xf32>
    %cst_8 = arith.constant 9.99999974E-6 : f32
    %21 = vector.broadcast %cst_8 : f32 to vector<4x1x1xf32>
    %22 = arith.addf %20, %21 : vector<4x1x1xf32>
    %23 = vector.broadcast %22 : vector<4x1x1xf32> to vector<4x1x256xf32>
    %24 = arith.divf %14, %23 : vector<4x1x256xf32>
    %c0_9 = arith.constant 0 : index
    %c0_10 = arith.constant 0 : index
    %c0_11 = arith.constant 0 : index
    %25 = vector.load %arg1[%c0_9, %c0_10, %c0_11] : memref<4x1x1xf32, #tpu.memory_space<vmem>>, vector<4x1x1xf32>
    %26 = vector.broadcast %25 : vector<4x1x1xf32> to vector<4x1x256xf32>
    %27 = arith.mulf %24, %26 : vector<4x1x256xf32>
    %c0_12 = arith.constant 0 : index
    %c0_13 = arith.constant 0 : index
    %c0_14 = arith.constant 0 : index
    %28 = vector.load %arg2[%c0_12, %c0_13, %c0_14] : memref<4x1x1xf32, #tpu.memory_space<vmem>>, vector<4x1x1xf32>
    %29 = vector.broadcast %28 : vector<4x1x1xf32> to vector<4x1x256xf32>
    %30 = arith.addf %27, %29 : vector<4x1x256xf32>
    %31 = arith.negf %30 : vector<4x1x256xf32>
    %32 = math.exp %31 : vector<4x1x256xf32>
    %cst_15 = arith.constant 1.000000e+00 : f32
    %33 = vector.broadcast %cst_15 : f32 to vector<4x1x256xf32>
    %34 = arith.addf %33, %32 : vector<4x1x256xf32>
    %35 = arith.divf %33, %34 : vector<4x1x256xf32>
    %36 = vector.broadcast %35 : vector<4x1x256xf32> to vector<4x4x256xf32>
    %37 = arith.mulf %0, %36 : vector<4x4x256xf32>
    %c0_16 = arith.constant 0 : index
    %c0_17 = arith.constant 0 : index
    %c0_18 = arith.constant 0 : index
    %38 = vector.load %arg4[%c0_16, %c0_17, %c0_18] : memref<4x4x256xf32, #tpu.memory_space<vmem>>, vector<4x4x256xf32>
    tpu.vector_store %arg4[%c0_16, %c0_17, %c0_18], %37 {strides = array<i32>} : memref<4x4x256xf32, #tpu.memory_space<vmem>>, vector<4x4x256xf32>,
    return
  }
  func.func @transform_0(%arg0: i32) -> (i32, i32, i32) {
    %c0_i32 = arith.constant 0 : i32
    %c0_i32_0 = arith.constant 0 : i32
    %c0_i32_1 = arith.constant 0 : i32
    return %arg0, %c0_i32, %c0_i32_0 : i32, i32, i32
  }
  func.func @transform_1(%arg0: i32) -> (i32, i32, i32) {
    %c0_i32 = arith.constant 0 : i32
    %c0_i32_0 = arith.constant 0 : i32
    %c0_i32_1 = arith.constant 0 : i32
    return %arg0, %c0_i32, %c0_i32_0 : i32, i32, i32
  }
  func.func @transform_2(%arg0: i32) -> (i32, i32, i32) {
    %c0_i32 = arith.constant 0 : i32
    %c0_i32_0 = arith.constant 0 : i32
    %c0_i32_1 = arith.constant 0 : i32
    return %arg0, %c0_i32, %c0_i32_0 : i32, i32, i32
  }
  func.func @transform_3(%arg0: i32) -> (i32, i32, i32) {
    %c0_i32 = arith.constant 0 : i32
    %c0_i32_0 = arith.constant 0 : i32
    %c0_i32_1 = arith.constant 0 : i32
    return %arg0, %c0_i32, %c0_i32_0 : i32, i32, i32
  }
}

</mosaic_0001>

<llo_original>
// kernel: tpu_custom_call.1
$region0: #{tpu_custom_call.1}
  #allocation0 [shape = 'u32[]', space=smem, size = 0x4, offset = 0x4, fixed_abs, tag = 'smem constant byte address 0x4 - core index']
  #allocation1 [shape = 'u32[72,128]{1,0:T(1,128)}', space=vmem, size = 0x9000, scoped, tag = 'internal scratch']
  %s0 = inlined_call_operand.vmem [shape: f32[8,1,1], index: 0, kind: input, shape index: {}]
  %s1 = inlined_call_operand.vmem [shape: f32[8,1,1], index: 1, kind: input, shape index: {}]
  %s2 = inlined_call_operand.hbm [shape: f32[8,4,256], index: 2, kind: input, shape index: {}]
  %s3 = inlined_call_operand.hbm [shape: f32[8,4,256], index: 3, kind: output, shape index: {}]
  %s4 = sld [smem:[#allocation0]]
  $region49: #{tpu_custom_call.1} parent=0
    _
  %s6 = ssub.s32 1, %s4
  %s7 = scalar_select 0, %s6, %s4
  $region1: #{tpu_custom_call.1} parent=0
    #allocation2 [shape = 'u8[32768]{0}', space=vmem, size = 0x8000, scoped, tag = 'input window, operand 2']
    #allocation3 [shape = 's32[2]{0}', space=sflag, size = 0x8, scoped, tag = 'scoped memory for tpu_custom_call.1']
    #allocation4 [shape = 's32[2]{0}', space=sflag, size = 0x8, scoped, tag = 'scoped memory for tpu_custom_call.1']
    #allocation5 [shape = 'u8[32768]{0}', space=vmem, size = 0x8000, scoped, tag = 'output window, operand 0']
    %8 = vsyncpa [#allocation3], 0
    %s9 = scalar_lea.sflag [#allocation3], 1
    %10 = vsyncpa %s9, 0
    %11 = vsyncpa [#allocation4], 0
    %s12 = scalar_lea.sflag [#allocation4], 1
    %13 = vsyncpa %s12, 0
    loop: start=0, step=1, limit=4
    $region2: #{tpu_custom_call.1} parent=1 // loop_pre_header
      _
    $region3: #{tpu_custom_call.1} parent=1 // loop_header
      %s15 = sphi 0, %s19
      %p16 = scmp.ge.s32.totalorder %s15, 4
      %s25 = sphi 0, %s27
      %s28 = sphi 0, %s25
      %s29 = sphi 0, %s28
      %s45 = sphi 0, %s29
      %s51 = sphi 0, %s53
      %s54 = sphi 0, %s51
      %s55 = sphi 0, %s54
      %s71 = sphi 0, %s55
      %s77 = sphi 0, %s79
      %s80 = sphi 0, %s77
      %s81 = sphi 0, %s80
      %s97 = sphi 0, %s81
      %s103 = sphi 0, %s105
      %s106 = sphi 0, %s103
      %s107 = sphi 0, %s106
      %s123 = sphi 0, %s107
    $region4: #{tpu_custom_call.1} parent=1 // loop_header_branch
      %18 = sbr.rel (%p16) target = $region8
    $region5: #{tpu_custom_call.1} parent=1 // loop_body
      %s20 = ssub.s32 %s15, 1
      %s21 = ssub.s32 %s15, 2
      %s22 = sadd.s32 %s15, 1
      %s23 = ssub.s32 %s15, %s22
      %p24 = scmp.eq.s32.totalorder %s23, 0
      %s26 = sadd.s32 %s25, 1
      %s27 = scalar_select %p24, %s25, %s26
      %p30 = pneg %p24
      %p31 = scmp.eq.s32.totalorder %s15, 1
      %p32 = por %p30, %p31
      %p33 = scmp.ne.s32.totalorder %s25, %s28
      %p34 = scmp.eq.s32.totalorder %s15, 0
      %p35 = por %p33, %p34
      %p36 = scmp.ne.s32.totalorder %s25, %s28
      %p37 = scmp.eq.s32.totalorder %s20, 1
      %p38 = por %p36, %p37
      %p39 = scmp.ne.s32.totalorder %s28, %s29
      %p40 = scmp.eq.s32.totalorder %s20, 0
      %p41 = por %p39, %p40
      %p42 = scmp.ne.s32.totalorder %s28, %s29
      %p43 = scmp.eq.s32.totalorder %s21, 1
      %p44 = por %p42, %p43
      %p46 = scmp.ne.s32.totalorder %s29, %s45
      %p47 = scmp.eq.s32.totalorder %s21, 0
      %p48 = por %p46, %p47
      %s49 = ssub.s32 %s15, %s22
      %p50 = scmp.eq.s32.totalorder %s49, 0
      %s52 = sadd.s32 %s51, 1
      %s53 = scalar_select %p50, %s51, %s52
      %p56 = pneg %p50
      %p57 = scmp.eq.s32.totalorder %s15, 1
      %p58 = por %p56, %p57
      %p59 = scmp.ne.s32.totalorder %s51, %s54
      %p60 = scmp.eq.s32.totalorder %s15, 0
      %p61 = por %p59, %p60
      %p62 = scmp.ne.s32.totalorder %s51, %s54
      %p63 = scmp.eq.s32.totalorder %s20, 1
      %p64 = por %p62, %p63
      %p65 = scmp.ne.s32.totalorder %s54, %s55
      %p66 = scmp.eq.s32.totalorder %s20, 0
      %p67 = por %p65, %p66
      %p68 = scmp.ne.s32.totalorder %s54, %s55
      %p69 = scmp.eq.s32.totalorder %s21, 1
      %p70 = por %p68, %p69
      %p72 = scmp.ne.s32.totalorder %s55, %s71
      %p73 = scmp.eq.s32.totalorder %s21, 0
      %p74 = por %p72, %p73
      %s75 = ssub.s32 %s15, %s22
      %p76 = scmp.eq.s32.totalorder %s75, 0
      %s78 = sadd.s32 %s77, 1
      %s79 = scalar_select %p76, %s77, %s78
      %p82 = pneg %p76
      %p83 = scmp.eq.s32.totalorder %s15, 1
      %p84 = por %p82, %p83
      %p85 = scmp.ne.s32.totalorder %s77, %s80
      %p86 = scmp.eq.s32.totalorder %s15, 0
      %p87 = por %p85, %p86
      %p88 = scmp.ne.s32.totalorder %s77, %s80
      %p89 = scmp.eq.s32.totalorder %s20, 1
      %p90 = por %p88, %p89
      %p91 = scmp.ne.s32.totalorder %s80, %s81
      %p92 = scmp.eq.s32.totalorder %s20, 0
      %p93 = por %p91, %p92
      %p94 = scmp.ne.s32.totalorder %s80, %s81
      %p95 = scmp.eq.s32.totalorder %s21, 1
      %p96 = por %p94, %p95
      %p98 = scmp.ne.s32.totalorder %s81, %s97
      %p99 = scmp.eq.s32.totalorder %s21, 0
      %p100 = por %p98, %p99
      %s101 = ssub.s32 %s15, %s22
      %p102 = scmp.eq.s32.totalorder %s101, 0
      %s104 = sadd.s32 %s103, 1
      %s105 = scalar_select %p102, %s103, %s104
      %p108 = pneg %p102
      %p109 = scmp.eq.s32.totalorder %s15, 1
      %p110 = por %p108, %p109
      %p111 = scmp.ne.s32.totalorder %s103, %s106
      %p112 = scmp.eq.s32.totalorder %s15, 0
      %p113 = por %p111, %p112
      %p114 = scmp.ne.s32.totalorder %s103, %s106
      %p115 = scmp.eq.s32.totalorder %s20, 1
      %p116 = por %p114, %p115
      %p117 = scmp.ne.s32.totalorder %s106, %s107
      %p118 = scmp.eq.s32.totalorder %s20, 0
      %p119 = por %p117, %p118
      %p120 = scmp.ne.s32.totalorder %s106, %s107
      %p121 = scmp.eq.s32.totalorder %s21, 1
      %p122 = por %p120, %p121
      %p124 = scmp.ne.s32.totalorder %s107, %s123
      %p125 = scmp.eq.s32.totalorder %s21, 0
      %p126 = por %p124, %p125
      %p127 = scmp.le.s32.totalorder 1, %s15
      %p128 = scmp.lt.s32.totalorder %s15, 3
      %p129 = pnand %p127, %p128
      %p130 = pneg %p129
      // Predicated region
      $region9: #{tpu_custom_call.1} parent=5 // pred_check
        _
      $region10: #{tpu_custom_call.1} parent=5 // pred_check_branch
        %132 = sbr.rel (%p129) target = $region12
      $region11: #{tpu_custom_call.1} parent=5 // pred_region
        %s133 = ssub.s32 %s15, 1
      $region12: #{tpu_custom_call.1} parent=5 // pred_fallthru
        _
      %p134 = scmp.lt.s32.totalorder %s15, 2
      // Predicated region
      $region13: #{tpu_custom_call.1} parent=5 // pred_check
        %p135 = pneg %p134
      $region14: #{tpu_custom_call.1} parent=5 // pred_check_branch
        %137 = sbr.rel (%p135) target = $region16
      $region15: #{tpu_custom_call.1} parent=5 // pred_region
        // Predicated region
        $region17: #{tpu_custom_call.1} parent=15 // pred_check
          %p138 = pneg %p35
        $region18: #{tpu_custom_call.1} parent=15 // pred_check_branch
          %140 = sbr.rel (%p138) target = $region20
        $region19: #{tpu_custom_call.1} parent=15 // pred_region
          %s141 = smul.u32 4, %s15
          %p142 = scmp.lt.s32.totalorder %s141, 7
          %s143 = scalar_select %p142, %s141, 7
          %s144 = scalar_lea.vmem %s0, %s143
          %s145 = smul.u32 4, %s15
        $region20: #{tpu_custom_call.1} parent=15 // pred_fallthru
          _
        // Predicated region
        $region21: #{tpu_custom_call.1} parent=15 // pred_check
          %p146 = pneg %p61
        $region22: #{tpu_custom_call.1} parent=15 // pred_check_branch
          %148 = sbr.rel (%p146) target = $region24
        $region23: #{tpu_custom_call.1} parent=15 // pred_region
          %s149 = smul.u32 4, %s15
          %p150 = scmp.lt.s32.totalorder %s149, 7
          %s151 = scalar_select %p150, %s149, 7
          %s152 = scalar_lea.vmem %s1, %s151
          %s153 = smul.u32 4, %s15
        $region24: #{tpu_custom_call.1} parent=15 // pred_fallthru
          _
        // Predicated region
        $region25: #{tpu_custom_call.1} parent=15 // pred_check
          %p154 = pneg %p87
        $region26: #{tpu_custom_call.1} parent=15 // pred_check_branch
          %156 = sbr.rel (%p154) target = $region28
        $region27: #{tpu_custom_call.1} parent=15 // pred_region
          %s157 = sand.u32 %s77, 1
          %s158 = scalar_lea.sflag [#allocation3], %s157
          %s159 = sand.u32 %s77, 1
          %s160 = smul.addr %s159, 32
          %s161 = scalar_lea.vmem [#allocation2], %s160
          %s162 = smul.u32 4, %s15
          %164 = vsyncadd %s158, 0
          %s165 = smul.addr %s162, 2
          %s166 = smul.addr %s165, 4
          %s167 = scalar_lea.hbm %s2, %s166
          %s168 = sshll.u32 %s167, 4
          %s169 = int_to_ptr.hbm [resolvable:$true] %s168
          %s170 = sshll.u32 %s161, 4
          %s171 = int_to_ptr.vmem [resolvable:$true] %s170
          %176 = dma.hbm_to_vmem [thread:$0]  %s169, 512, %s171, %s158, 128, 128, 8
        $region28: #{tpu_custom_call.1} parent=15 // pred_fallthru
          _
      $region16: #{tpu_custom_call.1} parent=5 // pred_fallthru
        _
      %p177 = scmp.le.s32.totalorder 1, %s15
      %p178 = scmp.lt.s32.totalorder %s15, 3
      %p179 = pnand %p177, %p178
      %p180 = pneg %p179
      // Predicated region
      $region29: #{tpu_custom_call.1} parent=5 // pred_check
        _
      $region30: #{tpu_custom_call.1} parent=5 // pred_check_branch
        %182 = sbr.rel (%p179) target = $region32
      $region31: #{tpu_custom_call.1} parent=5 // pred_region
        %s183 = ssub.s32 %s15, 1
        %s184 = sand.u32 %s80, 1
        %s185 = scalar_lea.sflag [#allocation3], %s184
        %s186 = sand.u32 %s80, 1
        %s187 = smul.addr %s186, 32
        %s188 = scalar_lea.vmem [#allocation2], %s187
        // Predicated region
        $region33: #{tpu_custom_call.1} parent=31 // pred_check
          %p189 = pneg %p93
        $region34: #{tpu_custom_call.1} parent=31 // pred_check_branch
          %191 = sbr.rel (%p189) target = $region36
        $region35: #{tpu_custom_call.1} parent=31 // pred_region
          %193 = dma.done %s185, 512
        $region36: #{tpu_custom_call.1} parent=31 // pred_fallthru
          _
        %s194 = smul.u32 4, %s20
        %p195 = scmp.lt.s32.totalorder %s194, 7
        %s196 = scalar_select %p195, %s194, 7
        %s197 = scalar_lea.vmem %s0, %s196
        %p198 = pneg %p41
        %p199 = pneg %p38
        %s200 = smul.u32 4, %s20
        %p201 = scmp.lt.s32.totalorder %s200, 7
        %s202 = scalar_select %p201, %s200, 7
        %s203 = scalar_lea.vmem %s1, %s202
        %p204 = pneg %p67
        %p205 = pneg %p64
        %s206 = sand.u32 %s80, 1
        %s207 = scalar_lea.sflag [#allocation3], %s206
        %s208 = sand.u32 %s80, 1
        %s209 = smul.addr %s208, 32
        %s210 = scalar_lea.vmem [#allocation2], %s209
        %p211 = pneg %p93
        %p212 = pneg %p90
        %p213 = pneg %p119
        %p214 = pneg %p116
        %s215 = sand.u32 %s106, 1
        %s216 = scalar_lea.sflag [#allocation4], %s215
        %s217 = sand.u32 %s106, 1
        %s218 = smul.addr %s217, 32
        %s219 = scalar_lea.vmem [#allocation5], %s218
        %s220 = smul.u32 4, %s20
        %p221 = scmp.lt.s32.totalorder %s220, 7
        %s222 = scalar_select %p221, %s220, 7
        %s223 = scalar_lea.vmem %s0, %s222
        %s224 = smul.u32 4, %s20
        %s225 = smul.u32 4, %s20
        %p226 = scmp.lt.s32.totalorder %s225, 7
        %s227 = scalar_select %p226, %s225, 7
        %s228 = scalar_lea.vmem %s1, %s227
        %s229 = smul.u32 4, %s20
        %s230 = smul.u32 4, %s20
        %s231 = smul.u32 4, %s20
        %v232 = vld [vmem:[%s188] sm:$0xff]
        %v233 = vld [vmem:[%s188 + $0x8] sm:$0xff]
        %v234 = vld [vmem:[%s188 + $0x10] sm:$0xff]
        %v235 = vld [vmem:[%s188 + $0x18] sm:$0xff]
        %240 = vst [vmem:[#allocation1] ss:$2 sm:$0xff] %v232
        %v241 = vld.sshfl [vmem:[#allocation1] sm:$0xff pattern:$0x75316420]
        %v242 = vld.sshfl [vmem:[#allocation1 + $0x8] sm:$0xff pattern:$0x75316420]
        %s243 = scalar_lea.vmem [#allocation1], 16
        %244 = vst [vmem:[%s243] ss:$2 sm:$0xff] %v233
        %v245 = vld.sshfl [vmem:[#allocation1 + $0x10] sm:$0xff pattern:$0x75316420]
        %v246 = vld.sshfl [vmem:[#allocation1 + $0x18] sm:$0xff pattern:$0x75316420]
        %s247 = scalar_lea.vmem [#allocation1], 32
        %248 = vst [vmem:[%s247] ss:$2 sm:$0xff] %v234
        %v249 = vld.sshfl [vmem:[#allocation1 + $0x20] sm:$0xff pattern:$0x75316420]
        %v250 = vld.sshfl [vmem:[#allocation1 + $0x28] sm:$0xff pattern:$0x75316420]
        %s251 = scalar_lea.vmem [#allocation1], 48
        %252 = vst [vmem:[%s251] ss:$2 sm:$0xff] %v235
        %v253 = vld.sshfl [vmem:[#allocation1 + $0x30] sm:$0xff pattern:$0x75316420]
        %v254 = vld.sshfl [vmem:[#allocation1 + $0x38] sm:$0xff pattern:$0x75316420]
        %vm263 = vcmask 1043456
        %v264 = vsel %vm263, %v241, 0.0
        %v265 = vsel %vm263, %v242, 0.0
        %v266 = vadd.f32 %v264, %v265
        %267 = vadd.xlane.f32.xlu0 %v266
        %v268 = vpop.xlane.xlu0 %267
        %v269 = vsel %vm263, %v245, 0.0
        %v270 = vsel %vm263, %v246, 0.0
        %v271 = vadd.f32 %v269, %v270
        %272 = vadd.xlane.f32.xlu0 %v271
        %v273 = vpop.xlane.xlu0 %272
        %v274 = vsel %vm263, %v249, 0.0
        %v275 = vsel %vm263, %v250, 0.0
        %v276 = vadd.f32 %v274, %v275
        %277 = vadd.xlane.f32.xlu0 %v276
        %v278 = vpop.xlane.xlu0 %277
        %v279 = vsel %vm263, %v253, 0.0
        %v280 = vsel %vm263, %v254, 0.0
        %v281 = vadd.f32 %v279, %v280
        %282 = vadd.xlane.f32.xlu0 %v281
        %v283 = vpop.xlane.xlu0 %282
        %v284 = vmul.f32 %v268, 0.00390625
        %v285 = vmul.f32 %v273, 0.00390625
        %v286 = vmul.f32 %v278, 0.00390625
        %v287 = vmul.f32 %v283, 0.00390625
        %v293 = vunpack.c.l.s4 839922192
        %v294 = vunpack.c.0.s8 %v293
        %v295 = vperm.slane %v284, %v294
        %v297 = vunpack.c.l.s4 839922192
        %v298 = vunpack.c.0.s8 %v297
        %v299 = vperm.slane %v285, %v298
        %v301 = vunpack.c.l.s4 839922192
        %v302 = vunpack.c.0.s8 %v301
        %v303 = vperm.slane %v286, %v302
        %v305 = vunpack.c.l.s4 839922192
        %v306 = vunpack.c.0.s8 %v305
        %v307 = vperm.slane %v287, %v306
        %v312 = vmul.f32 %v232, %v295
        %v313 = vmul.f32 %v233, %v299
        %v314 = vmul.f32 %v234, %v303
        %v315 = vmul.f32 %v235, %v307
        %320 = vst [vmem:[#allocation1] ss:$2 sm:$0xff] %v312
        %v321 = vld.sshfl [vmem:[#allocation1] sm:$0xff pattern:$0x75316420]
        %v322 = vld.sshfl [vmem:[#allocation1 + $0x8] sm:$0xff pattern:$0x75316420]
        %s323 = scalar_lea.vmem [#allocation1], 16
        %324 = vst [vmem:[%s323] ss:$2 sm:$0xff] %v313
        %v325 = vld.sshfl [vmem:[#allocation1 + $0x10] sm:$0xff pattern:$0x75316420]
        %v326 = vld.sshfl [vmem:[#allocation1 + $0x18] sm:$0xff pattern:$0x75316420]
        %s327 = scalar_lea.vmem [#allocation1], 32
        %328 = vst [vmem:[%s327] ss:$2 sm:$0xff] %v314
        %v329 = vld.sshfl [vmem:[#allocation1 + $0x20] sm:$0xff pattern:$0x75316420]
        %v330 = vld.sshfl [vmem:[#allocation1 + $0x28] sm:$0xff pattern:$0x75316420]
        %s331 = scalar_lea.vmem [#allocation1], 48
        %332 = vst [vmem:[%s331] ss:$2 sm:$0xff] %v315
        %v333 = vld.sshfl [vmem:[#allocation1 + $0x30] sm:$0xff pattern:$0x75316420]
        %v334 = vld.sshfl [vmem:[#allocation1 + $0x38] sm:$0xff pattern:$0x75316420]
        %v343 = vsel %vm263, %v321, 0.0
        %v344 = vrot.slane %v343, 4
        %v345 = vadd.f32 %v343, %v344
        %v346 = vrot.slane %v345, 2
        %v347 = vadd.f32 %v345, %v346
        %v348 = vrot.slane %v347, 1
        %v349 = vadd.f32 %v347, %v348
        %v350 = vsel %vm263, %v322, 0.0
        %v351 = vrot.slane %v350, 4
        %v352 = vadd.f32 %v350, %v351
        %v353 = vrot.slane %v352, 2
        %v354 = vadd.f32 %v352, %v353
        %v355 = vrot.slane %v354, 1
        %v356 = vadd.f32 %v354, %v355
        %v357 = vsel %vm263, %v325, 0.0
        %v358 = vrot.slane %v357, 4
        %v359 = vadd.f32 %v357, %v358
        %v360 = vrot.slane %v359, 2
        %v361 = vadd.f32 %v359, %v360
        %v362 = vrot.slane %v361, 1
        %v363 = vadd.f32 %v361, %v362
        %v364 = vsel %vm263, %v326, 0.0
        %v365 = vrot.slane %v364, 4
        %v366 = vadd.f32 %v364, %v365
        %v367 = vrot.slane %v366, 2
        %v368 = vadd.f32 %v366, %v367
        %v369 = vrot.slane %v368, 1
        %v370 = vadd.f32 %v368, %v369
        %v371 = vsel %vm263, %v329, 0.0
        %v372 = vrot.slane %v371, 4
        %v373 = vadd.f32 %v371, %v372
        %v374 = vrot.slane %v373, 2
        %v375 = vadd.f32 %v373, %v374
        %v376 = vrot.slane %v375, 1
        %v377 = vadd.f32 %v375, %v376
        %v378 = vsel %vm263, %v330, 0.0
        %v379 = vrot.slane %v378, 4
        %v380 = vadd.f32 %v378, %v379
        %v381 = vrot.slane %v380, 2
        %v382 = vadd.f32 %v380, %v381
        %v383 = vrot.slane %v382, 1
        %v384 = vadd.f32 %v382, %v383
        %v385 = vsel %vm263, %v333, 0.0
        %v386 = vrot.slane %v385, 4
        %v387 = vadd.f32 %v385, %v386
        %v388 = vrot.slane %v387, 2
        %v389 = vadd.f32 %v387, %v388
        %v390 = vrot.slane %v389, 1
        %v391 = vadd.f32 %v389, %v390
        %v392 = vsel %vm263, %v334, 0.0
        %v393 = vrot.slane %v392, 4
        %v394 = vadd.f32 %v392, %v393
        %v395 = vrot.slane %v394, 2
        %v396 = vadd.f32 %v394, %v395
        %v397 = vrot.slane %v396, 1
        %v398 = vadd.f32 %v396, %v397
        %v399 = vadd.f32 %v349, %v356
        %400 = vadd.xlane.f32.xlu0 %v399
        %v401 = vpop.xlane.xlu0 %400
        %v402 = vadd.f32 %v363, %v370
        %403 = vadd.xlane.f32.xlu0 %v402
        %v404 = vpop.xlane.xlu0 %403
        %v405 = vadd.f32 %v377, %v384
        %406 = vadd.xlane.f32.xlu0 %v405
        %v407 = vpop.xlane.xlu0 %406
        %v408 = vadd.f32 %v391, %v398
        %409 = vadd.xlane.f32.xlu0 %v408
        %v410 = vpop.xlane.xlu0 %409
        %v411 = vmul.f32 %v401, 0.00390625
        %v412 = vmul.f32 %v404, 0.00390625
        %v413 = vmul.f32 %v407, 0.00390625
        %v414 = vmul.f32 %v410, 0.00390625
        %v415 = vsub.f32 %v349, %v411
        %v416 = vsub.f32 %v356, %v411
        %v417 = vsub.f32 %v363, %v412
        %v418 = vsub.f32 %v370, %v412
        %v419 = vsub.f32 %v377, %v413
        %v420 = vsub.f32 %v384, %v413
        %v421 = vsub.f32 %v391, %v414
        %v422 = vsub.f32 %v398, %v414
        %v423 = vmul.f32 %v415, %v415
        %v424 = vmul.f32 %v416, %v416
        %v425 = vmul.f32 %v417, %v417
        %v426 = vmul.f32 %v418, %v418
        %v427 = vmul.f32 %v419, %v419
        %v428 = vmul.f32 %v420, %v420
        %v429 = vmul.f32 %v421, %v421
        %v430 = vmul.f32 %v422, %v422
        %v431 = vadd.f32 %v423, %v424
        %432 = vadd.xlane.f32.xlu0 %v431
        %v433 = vpop.xlane.xlu0 %432
        %v434 = vadd.f32 %v425, %v426
        %435 = vadd.xlane.f32.xlu0 %v434
        %v436 = vpop.xlane.xlu0 %435
        %v437 = vadd.f32 %v427, %v428
        %438 = vadd.xlane.f32.xlu0 %v437
        %v439 = vpop.xlane.xlu0 %438
        %v440 = vadd.f32 %v429, %v430
        %441 = vadd.xlane.f32.xlu0 %v440
        %v442 = vpop.xlane.xlu0 %441
        %v443 = vrcp.pop 255.0
        %v444 = vmul.f32 255.0, %v443
        %v445 = vsub.f32 1.0, %v444
        %v446 = vmul.f32 %v443, %v445
        %v447 = vadd.f32 %v443, %v446
        %vm448 = vweird.f32 %v443
        %v449 = vsel %vm448, %v443, %v447
        %v450 = vmul.f32 %v433, %v449
        %v451 = vmul.f32 %v436, %v449
        %v452 = vmul.f32 %v439, %v449
        %v453 = vmul.f32 %v442, %v449
        %v454 = vrsqrt.pop %v450
        %v455 = vmul.f32 %v454, %v450
        %v456 = vmul.f32 %v455, %v454
        %v457 = vmul.f32 0.5, %v456
        %v458 = vsub.f32 1.5, %v457
        %v459 = vmul.f32 %v454, %v458
        %v460 = vmul.f32 %v450, %v459
        %vm461 = vcmp.eq.f32.partialorder %v450, inf
        %v462 = vsel %vm461, %v450, %v460
        %vm463 = vcmp.eq.f32.partialorder %v450, 0.0
        %v464 = vand.u32 %v450, 2147483648
        %v465 = vsel %vm463, %v464, %v462
        %v466 = vrsqrt.pop %v451
        %v467 = vmul.f32 %v466, %v451
        %v468 = vmul.f32 %v467, %v466
        %v469 = vmul.f32 0.5, %v468
        %v470 = vsub.f32 1.5, %v469
        %v471 = vmul.f32 %v466, %v470
        %v472 = vmul.f32 %v451, %v471
        %vm473 = vcmp.eq.f32.partialorder %v451, inf
        %v474 = vsel %vm473, %v451, %v472
        %vm475 = vcmp.eq.f32.partialorder %v451, 0.0
        %v476 = vand.u32 %v451, 2147483648
        %v477 = vsel %vm475, %v476, %v474
        %v478 = vrsqrt.pop %v452
        %v479 = vmul.f32 %v478, %v452
        %v480 = vmul.f32 %v479, %v478
        %v481 = vmul.f32 0.5, %v480
        %v482 = vsub.f32 1.5, %v481
        %v483 = vmul.f32 %v478, %v482
        %v484 = vmul.f32 %v452, %v483
        %vm485 = vcmp.eq.f32.partialorder %v452, inf
        %v486 = vsel %vm485, %v452, %v484
        %vm487 = vcmp.eq.f32.partialorder %v452, 0.0
        %v488 = vand.u32 %v452, 2147483648
        %v489 = vsel %vm487, %v488, %v486
        %v490 = vrsqrt.pop %v453
        %v491 = vmul.f32 %v490, %v453
        %v492 = vmul.f32 %v491, %v490
        %v493 = vmul.f32 0.5, %v492
        %v494 = vsub.f32 1.5, %v493
        %v495 = vmul.f32 %v490, %v494
        %v496 = vmul.f32 %v453, %v495
        %vm497 = vcmp.eq.f32.partialorder %v453, inf
        %v498 = vsel %vm497, %v453, %v496
        %vm499 = vcmp.eq.f32.partialorder %v453, 0.0
        %v500 = vand.u32 %v453, 2147483648
        %v501 = vsel %vm499, %v500, %v498
        %v502 = vadd.f32 %v465, 1e-05
        %v503 = vadd.f32 %v477, 1e-05
        %v504 = vadd.f32 %v489, 1e-05
        %v505 = vadd.f32 %v501, 1e-05
        %v506 = vrcp.pop %v502
        %v507 = vmul.f32 %v502, %v506
        %v508 = vsub.f32 1.0, %v507
        %v509 = vmul.f32 %v506, %v508
        %v510 = vadd.f32 %v506, %v509
        %vm511 = vweird.f32 %v502
        %vm512 = vweird.f32 %v506
        %vm513 = vmor %vm511, %vm512
        %v514 = vsel %vm513, %v506, %v510
        %v515 = vand.u32 2147483647, %v502
        %vm516 = vcmp.eq.f32.partialorder %v515, 8.507059e+37
        %v517 = vand.u32 %v502, 2147483648
        %v518 = vor.u32 1.1754944e-38, %v517
        %v519 = vsel %vm516, %v518, %v514
        %v520 = vmul.f32 %v415, %v519
        %v521 = vmul.f32 %v416, %v519
        %v522 = vrcp.pop %v503
        %v523 = vmul.f32 %v503, %v522
        %v524 = vsub.f32 1.0, %v523
        %v525 = vmul.f32 %v522, %v524
        %v526 = vadd.f32 %v522, %v525
        %vm527 = vweird.f32 %v503
        %vm528 = vweird.f32 %v522
        %vm529 = vmor %vm527, %vm528
        %v530 = vsel %vm529, %v522, %v526
        %v531 = vand.u32 2147483647, %v503
        %vm532 = vcmp.eq.f32.partialorder %v531, 8.507059e+37
        %v533 = vand.u32 %v503, 2147483648
        %v534 = vor.u32 1.1754944e-38, %v533
        %v535 = vsel %vm532, %v534, %v530
        %v536 = vmul.f32 %v417, %v535
        %v537 = vmul.f32 %v418, %v535
        %v538 = vrcp.pop %v504
        %v539 = vmul.f32 %v504, %v538
        %v540 = vsub.f32 1.0, %v539
        %v541 = vmul.f32 %v538, %v540
        %v542 = vadd.f32 %v538, %v541
        %vm543 = vweird.f32 %v504
        %vm544 = vweird.f32 %v538
        %vm545 = vmor %vm543, %vm544
        %v546 = vsel %vm545, %v538, %v542
        %v547 = vand.u32 2147483647, %v504
        %vm548 = vcmp.eq.f32.partialorder %v547, 8.507059e+37
        %v549 = vand.u32 %v504, 2147483648
        %v550 = vor.u32 1.1754944e-38, %v549
        %v551 = vsel %vm548, %v550, %v546
        %v552 = vmul.f32 %v419, %v551
        %v553 = vmul.f32 %v420, %v551
        %v554 = vrcp.pop %v505
        %v555 = vmul.f32 %v505, %v554
        %v556 = vsub.f32 1.0, %v555
        %v557 = vmul.f32 %v554, %v556
        %v558 = vadd.f32 %v554, %v557
        %vm559 = vweird.f32 %v505
        %vm560 = vweird.f32 %v554
        %vm561 = vmor %vm559, %vm560
        %v562 = vsel %vm561, %v554, %v558
        %v563 = vand.u32 2147483647, %v505
        %vm564 = vcmp.eq.f32.partialorder %v563, 8.507059e+37
        %v565 = vand.u32 %v505, 2147483648
        %v566 = vor.u32 1.1754944e-38, %v565
        %v567 = vsel %vm564, %v566, %v562
        %v568 = vmul.f32 %v421, %v567
        %v569 = vmul.f32 %v422, %v567
        %v570 = vld [vmem:[%s223] sm:$0x1]
        %v571 = vld [vmem:[%s223 + $0x1] sm:$0x1]
        %v572 = vld [vmem:[%s223 + $0x2] sm:$0x1]
        %v573 = vld [vmem:[%s223 + $0x3] sm:$0x1]
        %575 = vset.pattern.permute.xlu0 0
        %576 = vperm.xlu0 %575, %v570
        %v577 = vpop.permute.xlu0 %576
        %v579 = vperm.slane %v577, 0
        %581 = vset.pattern.permute.xlu0 0
        %582 = vperm.xlu0 %581, %v571
        %v583 = vpop.permute.xlu0 %582
        %v585 = vperm.slane %v583, 0
        %587 = vset.pattern.permute.xlu0 0
        %588 = vperm.xlu0 %587, %v572
        %v589 = vpop.permute.xlu0 %588
        %v591 = vperm.slane %v589, 0
        %593 = vset.pattern.permute.xlu0 0
        %594 = vperm.xlu0 %593, %v573
        %v595 = vpop.permute.xlu0 %594
        %v597 = vperm.slane %v595, 0
        %v598 = vmul.f32 %v520, %v579
        %v599 = vmul.f32 %v521, %v579
        %v600 = vmul.f32 %v536, %v585
        %v601 = vmul.f32 %v537, %v585
        %v602 = vmul.f32 %v552, %v591
        %v603 = vmul.f32 %v553, %v591
        %v604 = vmul.f32 %v568, %v597
        %v605 = vmul.f32 %v569, %v597
        %v606 = vld [vmem:[%s228] sm:$0x1]
        %v607 = vld [vmem:[%s228 + $0x1] sm:$0x1]
        %v608 = vld [vmem:[%s228 + $0x2] sm:$0x1]
        %v609 = vld [vmem:[%s228 + $0x3] sm:$0x1]
        %611 = vset.pattern.permute.xlu0 0
        %612 = vperm.xlu0 %611, %v606
        %v613 = vpop.permute.xlu0 %612
        %v615 = vperm.slane %v613, 0
        %617 = vset.pattern.permute.xlu0 0
        %618 = vperm.xlu0 %617, %v607
        %v619 = vpop.permute.xlu0 %618
        %v621 = vperm.slane %v619, 0
        %623 = vset.pattern.permute.xlu0 0
        %624 = vperm.xlu0 %623, %v608
        %v625 = vpop.permute.xlu0 %624
        %v627 = vperm.slane %v625, 0
        %629 = vset.pattern.permute.xlu0 0
        %630 = vperm.xlu0 %629, %v609
        %v631 = vpop.permute.xlu0 %630
        %v633 = vperm.slane %v631, 0
        %v634 = vadd.f32 %v598, %v615
        %v635 = vadd.f32 %v599, %v615
        %v636 = vadd.f32 %v600, %v621
        %v637 = vadd.f32 %v601, %v621
        %v638 = vadd.f32 %v602, %v627
        %v639 = vadd.f32 %v603, %v627
        %v640 = vadd.f32 %v604, %v633
        %v641 = vadd.f32 %v605, %v633
        %v642 = vxor.u32 %v634, 2147483648
        %v643 = vxor.u32 %v635, 2147483648
        %v644 = vxor.u32 %v636, 2147483648
        %v645 = vxor.u32 %v637, 2147483648
        %v646 = vxor.u32 %v638, 2147483648
        %v647 = vxor.u32 %v639, 2147483648
        %v648 = vxor.u32 %v640, 2147483648
        %v649 = vxor.u32 %v641, 2147483648
        %v650 = vmul.f32 %v642, 1.442695
        %v651 = vpow.pop %v650
        %v652 = vmul.f32 %v643, 1.442695
        %v653 = vpow.pop %v652
        %v654 = vmul.f32 %v644, 1.442695
        %v655 = vpow.pop %v654
        %v656 = vmul.f32 %v645, 1.442695
        %v657 = vpow.pop %v656
        %v658 = vmul.f32 %v646, 1.442695
        %v659 = vpow.pop %v658
        %v660 = vmul.f32 %v647, 1.442695
        %v661 = vpow.pop %v660
        %v662 = vmul.f32 %v648, 1.442695
        %v663 = vpow.pop %v662
        %v664 = vmul.f32 %v649, 1.442695
        %v665 = vpow.pop %v664
        %v666 = vadd.f32 %v651, 1.0
        %v667 = vadd.f32 %v653, 1.0
        %v668 = vadd.f32 %v655, 1.0
        %v669 = vadd.f32 %v657, 1.0
        %v670 = vadd.f32 %v659, 1.0
        %v671 = vadd.f32 %v661, 1.0
        %v672 = vadd.f32 %v663, 1.0
        %v673 = vadd.f32 %v665, 1.0
        %v674 = vrcp.pop %v666
        %v675 = vmul.f32 %v666, %v674
        %v676 = vsub.f32 1.0, %v675
        %v677 = vmul.f32 %v674, %v676
        %v678 = vadd.f32 %v674, %v677
        %vm679 = vweird.f32 %v666
        %vm680 = vweird.f32 %v674
        %vm681 = vmor %vm679, %vm680
        %v682 = vsel %vm681, %v674, %v678
        %v683 = vand.u32 2147483647, %v666
        %vm684 = vcmp.eq.f32.partialorder %v683, 8.507059e+37
        %v685 = vand.u32 %v666, 2147483648
        %v686 = vor.u32 1.1754944e-38, %v685
        %v687 = vsel %vm684, %v686, %v682
        %v688 = vmul.f32 1.0, %v687
        %v689 = vrcp.pop %v667
        %v690 = vmul.f32 %v667, %v689
        %v691 = vsub.f32 1.0, %v690
        %v692 = vmul.f32 %v689, %v691
        %v693 = vadd.f32 %v689, %v692
        %vm694 = vweird.f32 %v667
        %vm695 = vweird.f32 %v689
        %vm696 = vmor %vm694, %vm695
        %v697 = vsel %vm696, %v689, %v693
        %v698 = vand.u32 2147483647, %v667
        %vm699 = vcmp.eq.f32.partialorder %v698, 8.507059e+37
        %v700 = vand.u32 %v667, 2147483648
        %v701 = vor.u32 1.1754944e-38, %v700
        %v702 = vsel %vm699, %v701, %v697
        %v703 = vmul.f32 1.0, %v702
        %v704 = vrcp.pop %v668
        %v705 = vmul.f32 %v668, %v704
        %v706 = vsub.f32 1.0, %v705
        %v707 = vmul.f32 %v704, %v706
        %v708 = vadd.f32 %v704, %v707
        %vm709 = vweird.f32 %v668
        %vm710 = vweird.f32 %v704
        %vm711 = vmor %vm709, %vm710
        %v712 = vsel %vm711, %v704, %v708
        %v713 = vand.u32 2147483647, %v668
        %vm714 = vcmp.eq.f32.partialorder %v713, 8.507059e+37
        %v715 = vand.u32 %v668, 2147483648
        %v716 = vor.u32 1.1754944e-38, %v715
        %v717 = vsel %vm714, %v716, %v712
        %v718 = vmul.f32 1.0, %v717
        %v719 = vrcp.pop %v669
        %v720 = vmul.f32 %v669, %v719
        %v721 = vsub.f32 1.0, %v720
        %v722 = vmul.f32 %v719, %v721
        %v723 = vadd.f32 %v719, %v722
        %vm724 = vweird.f32 %v669
        %vm725 = vweird.f32 %v719
        %vm726 = vmor %vm724, %vm725
        %v727 = vsel %vm726, %v719, %v723
        %v728 = vand.u32 2147483647, %v669
        %vm729 = vcmp.eq.f32.partialorder %v728, 8.507059e+37
        %v730 = vand.u32 %v669, 2147483648
        %v731 = vor.u32 1.1754944e-38, %v730
        %v732 = vsel %vm729, %v731, %v727
        %v733 = vmul.f32 1.0, %v732
        %v734 = vrcp.pop %v670
        %v735 = vmul.f32 %v670, %v734
        %v736 = vsub.f32 1.0, %v735
        %v737 = vmul.f32 %v734, %v736
        %v738 = vadd.f32 %v734, %v737
        %vm739 = vweird.f32 %v670
        %vm740 = vweird.f32 %v734
        %vm741 = vmor %vm739, %vm740
        %v742 = vsel %vm741, %v734, %v738
        %v743 = vand.u32 2147483647, %v670
        %vm744 = vcmp.eq.f32.partialorder %v743, 8.507059e+37
        %v745 = vand.u32 %v670, 2147483648
        %v746 = vor.u32 1.1754944e-38, %v745
        %v747 = vsel %vm744, %v746, %v742
        %v748 = vmul.f32 1.0, %v747
        %v749 = vrcp.pop %v671
        %v750 = vmul.f32 %v671, %v749
        %v751 = vsub.f32 1.0, %v750
        %v752 = vmul.f32 %v749, %v751
        %v753 = vadd.f32 %v749, %v752
        %vm754 = vweird.f32 %v671
        %vm755 = vweird.f32 %v749
        %vm756 = vmor %vm754, %vm755
        %v757 = vsel %vm756, %v749, %v753
        %v758 = vand.u32 2147483647, %v671
        %vm759 = vcmp.eq.f32.partialorder %v758, 8.507059e+37
        %v760 = vand.u32 %v671, 2147483648
        %v761 = vor.u32 1.1754944e-38, %v760
        %v762 = vsel %vm759, %v761, %v757
        %v763 = vmul.f32 1.0, %v762
        %v764 = vrcp.pop %v672
        %v765 = vmul.f32 %v672, %v764
        %v766 = vsub.f32 1.0, %v765
        %v767 = vmul.f32 %v764, %v766
        %v768 = vadd.f32 %v764, %v767
        %vm769 = vweird.f32 %v672
        %vm770 = vweird.f32 %v764
        %vm771 = vmor %vm769, %vm770
        %v772 = vsel %vm771, %v764, %v768
        %v773 = vand.u32 2147483647, %v672
        %vm774 = vcmp.eq.f32.partialorder %v773, 8.507059e+37
        %v775 = vand.u32 %v672, 2147483648
        %v776 = vor.u32 1.1754944e-38, %v775
        %v777 = vsel %vm774, %v776, %v772
        %v778 = vmul.f32 1.0, %v777
        %v779 = vrcp.pop %v673
        %v780 = vmul.f32 %v673, %v779
        %v781 = vsub.f32 1.0, %v780
        %v782 = vmul.f32 %v779, %v781
        %v783 = vadd.f32 %v779, %v782
        %vm784 = vweird.f32 %v673
        %vm785 = vweird.f32 %v779
        %vm786 = vmor %vm784, %vm785
        %v787 = vsel %vm786, %v779, %v783
        %v788 = vand.u32 2147483647, %v673
        %vm789 = vcmp.eq.f32.partialorder %v788, 8.507059e+37
        %v790 = vand.u32 %v673, 2147483648
        %v791 = vor.u32 1.1754944e-38, %v790
        %v792 = vsel %vm789, %v791, %v787
        %v793 = vmul.f32 1.0, %v792
        %v802 = vrot.slane %v703, 4
        %v803 = vrot.slane %v733, 4
        %v804 = vrot.slane %v763, 4
        %v805 = vrot.slane %v793, 4
        %v806 = vsel %vm263, %v688, %v802
        %v807 = vsel %vm263, %v718, %v803
        %v808 = vsel %vm263, %v748, %v804
        %v809 = vsel %vm263, %v778, %v805
        %v814 = vmul.f32 %v232, %v806
        %v815 = vmul.f32 %v233, %v807
        %v816 = vmul.f32 %v234, %v808
        %v817 = vmul.f32 %v235, %v809
        %818 = vst [vmem:[%s219] sm:$0xff] %v814
        %819 = vst [vmem:[%s219 + $0x8] sm:$0xff] %v815
        %820 = vst [vmem:[%s219 + $0x10] sm:$0xff] %v816
        %821 = vst [vmem:[%s219 + $0x18] sm:$0xff] %v817
        %s822 = sand.u32 %s106, 1
        %s823 = scalar_lea.sflag [#allocation4], %s822
        %s824 = sand.u32 %s106, 1
        %s825 = smul.addr %s824, 32
        %s826 = scalar_lea.vmem [#allocation5], %s825
        // Predicated region
        $region37: #{tpu_custom_call.1} parent=31 // pred_check
          %p827 = pneg %p116
        $region38: #{tpu_custom_call.1} parent=31 // pred_check_branch
          %829 = sbr.rel (%p827) target = $region40
        $region39: #{tpu_custom_call.1} parent=31 // pred_region
          %s830 = smul.u32 4, %s20
          %832 = vsyncadd %s823, 0
          %s833 = smul.addr %s830, 2
          %s834 = smul.addr %s833, 4
          %s835 = scalar_lea.hbm %s3, %s834
          %s836 = sshll.u32 %s826, 4
          %s837 = int_to_ptr.vmem [resolvable:$true] %s836
          %s838 = sshll.u32 %s835, 4
          %s839 = int_to_ptr.hbm [resolvable:$true] %s838
          %844 = dma.vmem_to_hbm [thread:$0]  %s837, 512, %s839, %s823, 128, 128, 8
        $region40: #{tpu_custom_call.1} parent=31 // pred_fallthru
          _
      $region32: #{tpu_custom_call.1} parent=5 // pred_fallthru
        _
      %p845 = scmp.le.s32.totalorder 2, %s15
      // Predicated region
      $region41: #{tpu_custom_call.1} parent=5 // pred_check
        %p846 = pneg %p845
      $region42: #{tpu_custom_call.1} parent=5 // pred_check_branch
        %848 = sbr.rel (%p846) target = $region44
      $region43: #{tpu_custom_call.1} parent=5 // pred_region
        %s849 = ssub.s32 %s15, 2
        // Predicated region
        $region45: #{tpu_custom_call.1} parent=43 // pred_check
          %p850 = pneg %p122
        $region46: #{tpu_custom_call.1} parent=43 // pred_check_branch
          %852 = sbr.rel (%p850) target = $region48
        $region47: #{tpu_custom_call.1} parent=43 // pred_region
          %s853 = sand.u32 %s107, 1
          %s854 = scalar_lea.sflag [#allocation4], %s853
          %s855 = sand.u32 %s107, 1
          %s856 = smul.addr %s855, 32
          %s857 = scalar_lea.vmem [#allocation5], %s856
          %859 = dma.done %s854, 512
        $region48: #{tpu_custom_call.1} parent=43 // pred_fallthru
          _
      $region44: #{tpu_custom_call.1} parent=5 // pred_fallthru
        _
    $region6: #{tpu_custom_call.1} parent=1 // loop_footer
      %s19 = sadd.s32 1, %s15
    $region7: #{tpu_custom_call.1} parent=1 // loop_footer_branch
      %14 = sbr.rel target = $region3
    $region8: #{tpu_custom_call.1} parent=1 // loop_exit
      _
    %860 = vsyncpa [#allocation3], 1
    %s861 = scalar_lea.sflag [#allocation3], 1
    %862 = vsyncpa %s861, 1
    %863 = vsyncpa [#allocation4], 1
    %s864 = scalar_lea.sflag [#allocation4], 1
    %865 = vsyncpa %s864, 1

</llo_original>
